<compile_context>
chip_gen: v7x
topology: tpu7x:2x2x1
jax: 0.10.0
libtpu: 0.0.40
codegen_flags: <defaults>
</compile_context>

<pallas_src>
import math

import jax
import jax.numpy as jnp
from jax.experimental import pallas as pl
from jax.experimental.pallas import tpu as pltpu

# ---------------- problem sizes (small, consistent with the module) ----------------
B = 2            # batch
S = 8            # number of visits (sequence length)
E = 32           # embedding_dim of the bert model
P = 1            # n_parallel_pools
N_TARGETS = 1    # module default; kernel assumes this (guarded in prepare_risk_params)

_INV_SQRT_E = 1.0 / math.sqrt(E)


def risk_kernel(xm_ref, params_ref, o_ref):
    """Whole (tiny) problem resident in VMEM; single invocation, no grid.

    xm_ref:     (B*S, E+1)  visit embeddings with the 0/1 visit mask appended as lane E
    params_ref: (E+3, E)    packed parameters:
                  rows 0..E-1 : values.weight^T                         (E, E)
                  row  E      : (collector @ keys.weight) / sqrt(E)     (1, E)
                  row  E+1    : linear.weight row (P*E == E)            (1, E)
                  row  E+2    : linear.bias in lane 0                   (1, E)
    o_ref:      (B, N_TARGETS)
    """
    x = xm_ref[:, 0:E]                              # (B*S, E)
    m_col = xm_ref[:, E:E + 1]                      # (B*S, 1)  0/1 visit mask

    wv_t = params_ref[0:E, :]                       # (E, E)   values.weight^T
    w_score = params_ref[E:E + 1, :]                # (1, E)   folded collector@Wk / sqrt(E)
    wl_row = params_ref[E + 1:E + 2, :]             # (1, E)   linear.weight row
    bias = params_ref[E + 2:E + 3, 0:1]             # (1, 1)   linear.bias

    # Values projection: the single remaining MXU matmul.
    v = jnp.dot(x, wv_t, preferred_element_type=jnp.float32)        # (B*S, E)

    # P == 1 attention score per row; K projection folded into w_score (VPU mul + lane reduce).
    scores = jnp.sum(x * w_score, axis=-1, keepdims=True)           # (B*S, 1)
    # NOTE: assumes the mask is exactly 0/1 (matches masked_fill(m == 0) semantics).
    scores = jnp.where(m_col == 0.0, jnp.float32(-1e9), scores)

    # Per-batch masked softmax + attention pool + ReLU + linear (B == 2, static unroll).
    ys = []
    for b in range(B):
        sb = scores[b * S:(b + 1) * S, :]            # (S, 1)  static value slice
        vb = v[b * S:(b + 1) * S, :]                 # (S, E)

        mx = jnp.max(sb, axis=0, keepdims=True)      # (1, 1)
        ex = jnp.exp(sb - mx)                        # (S, 1)
        p = ex / jnp.sum(ex, axis=0, keepdims=True)  # exact softmax (no approx recip)

        pooled = jnp.sum(p * vb, axis=0, keepdims=True)   # (1, E)  sublane reduce
        h = jnp.maximum(pooled, 0.0)                       # ReLU
        ys.append(jnp.sum(h * wl_row, axis=-1, keepdims=True))   # (1, 1)  final linear

    y = jnp.concatenate(ys, axis=0) + bias           # (B, 1), bias folded in-kernel
    o_ref[...] = y.astype(o_ref.dtype)               # single store


def prepare_risk_params(wk, wv, collector, wl, bl):
    """One-time parameter prep (hoisted out of the per-call hot path)."""
    assert P == 1 and N_TARGETS == 1, "kernel assumes n_parallel_pools == n_targets == 1"
    hi = jax.lax.Precision.HIGHEST
    # collector @ (x @ Wk^T)^T / sqrt(E)  ==  x @ (collector @ Wk)^T / sqrt(E)
    w_score = jnp.dot(collector, wk, precision=hi) * _INV_SQRT_E     # (1, E)
    wl_row = wl.reshape(1, P * E).astype(jnp.float32)                # (1, E)
    bias_row = jnp.zeros((1, E), jnp.float32).at[0, 0].set(bl[0])    # (1, E), bias in lane 0
    return jnp.concatenate(
        [wv.T.astype(jnp.float32), w_score.astype(jnp.float32), wl_row, bias_row],
        axis=0)                                                      # (E+3, E)


@jax.jit
def risk_forward(x, m, packed_params):
    """x: (B,S,E) f32, m: (B,S) 0/1 f32, packed_params: (E+3, E) from prepare_risk_params.
    Returns (B,) since N_TARGETS == 1."""
    # Per-call glue: append the mask as an extra lane column (lanes pad to 128 anyway).
    xm = jnp.concatenate(
        [x.reshape(B * S, E), m.reshape(B * S, 1).astype(x.dtype)], axis=-1)   # (B*S, E+1)

    out = pl.pallas_call(
        risk_kernel,
        out_shape=jax.ShapeDtypeStruct((B, N_TARGETS), jnp.float32),
        in_specs=[
            pl.BlockSpec(memory_space=pltpu.MemorySpace.VMEM),   # activations + mask
            pl.BlockSpec(memory_space=pltpu.MemorySpace.VMEM),   # packed parameters
        ],
        out_specs=pl.BlockSpec(memory_space=pltpu.MemorySpace.VMEM),
    )(xm, packed_params)

    return out.reshape(-1) if N_TARGETS == 1 else out


def risk_reference(x, m, wk, wv, collector, wl, bl):
    """Pure-JAX reference mirroring the PyTorch forward (eval mode)."""
    hi = jax.lax.Precision.HIGHEST
    k = jnp.einsum('bse,fe->bsf', x, wk, precision=hi)                  # keys
    v = jnp.einsum('bse,fe->bsf', x, wv, precision=hi)                  # values
    coll = jnp.broadcast_to(collector, (x.shape[0], P, E))              # (B,P,E)
    scores = jnp.einsum('bpe,bse->bps', coll, k, precision=hi) / math.sqrt(E)
    scores = jnp.where(m[:, None, :] == 0.0, -1e9, scores)
    p = jax.nn.softmax(scores, axis=-1)
    pooled = jnp.einsum('bps,bse->bpe', p, v, precision=hi).reshape(x.shape[0], -1)
    y = jnp.einsum('be,te->bt', jnp.maximum(pooled, 0.0), wl, precision=hi) + bl
    return y.reshape(-1) if N_TARGETS == 1 else y


if __name__ == "__main__":
    key = jax.random.PRNGKey(0)
    kx, km, kk, kv, kc, klw, klb = jax.random.split(key, 7)

    x = jax.random.normal(kx, (B, S, E), dtype=jnp.float32)
    # 0/1 visit mask, guarantee at least the first visit is present per batch
    m = (jax.random.uniform(km, (B, S)) > 0.3).astype(jnp.float32)
    m = m.at[:, 0].set(1.0)

    # deterministic synthetic parameters (shapes from Risk.__init__)
    wk = jax.random.normal(kk, (E, E), dtype=jnp.float32) * 0.05               # keys.weight
    wv = jax.random.normal(kv, (E, E), dtype=jnp.float32) * 0.05               # values.weight
    collector = jax.random.normal(kc, (P, E), dtype=jnp.float32)               # collector param
    wl = jax.random.normal(klw, (N_TARGETS, P * E), dtype=jnp.float32) * 0.05  # linear.weight
    bl = jax.random.normal(klb, (N_TARGETS,), dtype=jnp.float32) * 0.05        # linear.bias

    # one-time weight prep (transpose / algebraic fold / packing) — outside the hot path
    packed_params = jax.block_until_ready(prepare_risk_params(wk, wv, collector, wl, bl))

    y = risk_forward(x, m, packed_params)
    y = jax.block_until_ready(y)

    y_ref = risk_reference(x, m, wk, wv, collector, wl, bl)
    assert y.shape == y_ref.shape
    # exact softmax now; only residual differences are matmul rounding / op-reordering
    assert jnp.allclose(y, y_ref, atol=2e-4, rtol=2e-4), (y, y_ref)

    print("KERNEL_OK")
</pallas_src>

<mosaic_0001>
module attributes {stable_mosaic.version = 11 : i64} {
  func.func @risk_kernel(%arg0: memref<16x33xf32, #tpu.memory_space<vmem>>, %arg1: memref<35x32xf32, #tpu.memory_space<vmem>>, %arg2: memref<2x1xf32, #tpu.memory_space<vmem>>) attributes {dimension_semantics = [], scalar_prefetch = 0 : i64, scratch_operands = 0 : i64, tpu.core_type = #tpu.core_type<tc>} {
    %c0 = arith.constant 0 : index
    %c0_0 = arith.constant 0 : index
    %0 = vector.load %arg0[%c0, %c0_0] : memref<16x33xf32, #tpu.memory_space<vmem>>, vector<16x32xf32>
    %c0_1 = arith.constant 0 : index
    %c32 = arith.constant 32 : index
    %1 = vector.load %arg0[%c0_1, %c32] : memref<16x33xf32, #tpu.memory_space<vmem>>, vector<16x1xf32>
    %c0_2 = arith.constant 0 : index
    %c0_3 = arith.constant 0 : index
    %2 = vector.load %arg1[%c0_2, %c0_3] : memref<35x32xf32, #tpu.memory_space<vmem>>, vector<32x32xf32>
    %c32_4 = arith.constant 32 : index
    %c0_5 = arith.constant 0 : index
    %3 = vector.load %arg1[%c32_4, %c0_5] : memref<35x32xf32, #tpu.memory_space<vmem>>, vector<1x32xf32>
    %c33 = arith.constant 33 : index
    %c0_6 = arith.constant 0 : index
    %4 = vector.load %arg1[%c33, %c0_6] : memref<35x32xf32, #tpu.memory_space<vmem>>, vector<1x32xf32>
    %c34 = arith.constant 34 : index
    %c0_7 = arith.constant 0 : index
    %5 = vector.load %arg1[%c34, %c0_7] : memref<35x32xf32, #tpu.memory_space<vmem>>, vector<1x1xf32>
    %cst = arith.constant dense<0.000000e+00> : vector<16x32xf32>
    %6 = tpu.matmul %0, %2, %cst {dimension_numbers = #tpu.dot_dimension_numbers<[1], [0], [0], [1], [0, 0, 1, 1], [], []>} : vector<16x32xf32>, vector<32x32xf32>, vector<16x32xf32> -> vector<16x32xf32>
    %7 = vector.broadcast %3 : vector<1x32xf32> to vector<16x32xf32>
    %8 = arith.mulf %0, %7 : vector<16x32xf32>
    %cst_8 = arith.constant dense<0.000000e+00> : vector<16xf32>
    %9 = vector.multi_reduction <add>, %8, %cst_8 [1] : vector<16x32xf32> to vector<16xf32>
    %10 = vector.shape_cast %9 : vector<16xf32> to vector<16x1xf32>
    %cst_9 = arith.constant 0.000000e+00 : f32
    %11 = vector.broadcast %cst_9 : f32 to vector<16x1xf32>
    %12 = arith.cmpf oeq, %1, %11 : vector<16x1xf32>
    %cst_10 = arith.constant -1.000000e+09 : f32
    %13 = vector.broadcast %cst_10 : f32 to vector<16x1xf32>
    %14 = arith.select %12, %13, %10 : vector<16x1xi1>, vector<16x1xf32>
    %15 = vector.extract_strided_slice %14 {offsets = [0, 0], sizes = [8, 1], strides = [1, 1]} : vector<16x1xf32> to vector<8x1xf32>
    %16 = vector.extract_strided_slice %6 {offsets = [0, 0], sizes = [8, 32], strides = [1, 1]} : vector<16x32xf32> to vector<8x32xf32>
    %cst_11 = arith.constant dense<0xFF800000> : vector<1xf32>
    %17 = vector.multi_reduction <maximumf>, %15, %cst_11 [0] : vector<8x1xf32> to vector<1xf32>
    %18 = vector.shape_cast %17 : vector<1xf32> to vector<1x1xf32>
    %19 = vector.broadcast %18 : vector<1x1xf32> to vector<8x1xf32>
    %20 = arith.subf %15, %19 : vector<8x1xf32>
    %21 = math.exp %20 : vector<8x1xf32>
    %cst_12 = arith.constant dense<0.000000e+00> : vector<1xf32>
    %22 = vector.multi_reduction <add>, %21, %cst_12 [0] : vector<8x1xf32> to vector<1xf32>
    %23 = vector.shape_cast %22 : vector<1xf32> to vector<1x1xf32>
    %24 = vector.broadcast %23 : vector<1x1xf32> to vector<8x1xf32>
    %25 = arith.divf %21, %24 : vector<8x1xf32>
    %26 = vector.broadcast %25 : vector<8x1xf32> to vector<8x32xf32>
    %27 = arith.mulf %26, %16 : vector<8x32xf32>
    %cst_13 = arith.constant dense<0.000000e+00> : vector<32xf32>
    %28 = vector.multi_reduction <add>, %27, %cst_13 [0] : vector<8x32xf32> to vector<32xf32>
    %29 = vector.shape_cast %28 : vector<32xf32> to vector<1x32xf32>
    %cst_14 = arith.constant 0.000000e+00 : f32
    %30 = vector.broadcast %cst_14 : f32 to vector<1x32xf32>
    %31 = arith.maximumf %29, %30 : vector<1x32xf32>
    %32 = arith.mulf %31, %4 : vector<1x32xf32>
    %cst_15 = arith.constant dense<0.000000e+00> : vector<1xf32>
    %33 = vector.multi_reduction <add>, %32, %cst_15 [1] : vector<1x32xf32> to vector<1xf32>
    %34 = vector.shape_cast %33 : vector<1xf32> to vector<1x1xf32>
    %35 = vector.extract_strided_slice %14 {offsets = [8, 0], sizes = [8, 1], strides = [1, 1]} : vector<16x1xf32> to vector<8x1xf32>
    %36 = vector.extract_strided_slice %6 {offsets = [8, 0], sizes = [8, 32], strides = [1, 1]} : vector<16x32xf32> to vector<8x32xf32>
    %cst_16 = arith.constant dense<0xFF800000> : vector<1xf32>
    %37 = vector.multi_reduction <maximumf>, %35, %cst_16 [0] : vector<8x1xf32> to vector<1xf32>
    %38 = vector.shape_cast %37 : vector<1xf32> to vector<1x1xf32>
    %39 = vector.broadcast %38 : vector<1x1xf32> to vector<8x1xf32>
    %40 = arith.subf %35, %39 : vector<8x1xf32>
    %41 = math.exp %40 : vector<8x1xf32>
    %cst_17 = arith.constant dense<0.000000e+00> : vector<1xf32>
    %42 = vector.multi_reduction <add>, %41, %cst_17 [0] : vector<8x1xf32> to vector<1xf32>
    %43 = vector.shape_cast %42 : vector<1xf32> to vector<1x1xf32>
    %44 = vector.broadcast %43 : vector<1x1xf32> to vector<8x1xf32>
    %45 = arith.divf %41, %44 : vector<8x1xf32>
    %46 = vector.broadcast %45 : vector<8x1xf32> to vector<8x32xf32>
    %47 = arith.mulf %46, %36 : vector<8x32xf32>
    %cst_18 = arith.constant dense<0.000000e+00> : vector<32xf32>
    %48 = vector.multi_reduction <add>, %47, %cst_18 [0] : vector<8x32xf32> to vector<32xf32>
    %49 = vector.shape_cast %48 : vector<32xf32> to vector<1x32xf32>
    %cst_19 = arith.constant 0.000000e+00 : f32
    %50 = vector.broadcast %cst_19 : f32 to vector<1x32xf32>
    %51 = arith.maximumf %49, %50 : vector<1x32xf32>
    %52 = arith.mulf %51, %4 : vector<1x32xf32>
    %cst_20 = arith.constant dense<0.000000e+00> : vector<1xf32>
    %53 = vector.multi_reduction <add>, %52, %cst_20 [1] : vector<1x32xf32> to vector<1xf32>
    %54 = vector.shape_cast %53 : vector<1xf32> to vector<1x1xf32>
    %55 = tpu.concatenate %34, %54 in 0 : vector<1x1xf32>, vector<1x1xf32> -> vector<2x1xf32>
    %56 = vector.broadcast %5 : vector<1x1xf32> to vector<2x1xf32>
    %57 = arith.addf %55, %56 : vector<2x1xf32>
    %c0_21 = arith.constant 0 : index
    %c0_22 = arith.constant 0 : index
    %58 = vector.load %arg2[%c0_21, %c0_22] : memref<2x1xf32, #tpu.memory_space<vmem>>, vector<2x1xf32>
    tpu.vector_store %arg2[%c0_21, %c0_22], %57 {strides = array<i32>} : memref<2x1xf32, #tpu.memory_space<vmem>>, vector<2x1xf32>,
    return
  }
}

</mosaic_0001>

<llo_original>
// kernel: risk_forward.1
$region0: #{risk_forward.1}
  #allocation0 [shape = 'u32[]', space=smem, size = 0x4, offset = 0x4, fixed_abs, tag = 'smem constant byte address 0x4 - core index']
  #allocation1 [shape = 'u32[144,128]{1,0:T(1,128)}', space=vmem, size = 0x12000, scoped, tag = 'internal scratch']
  %s0 = inlined_call_operand.vmem [shape: f32[16,33], index: 0, kind: input, shape index: {}]
  %s1 = inlined_call_operand.vmem [shape: f32[35,32], index: 1, kind: input, shape index: {}]
  %s2 = inlined_call_operand.vmem [shape: f32[2,1], index: 2, kind: output, shape index: {}]
  %s3 = sld [smem:[#allocation0]]
  $region18: #{risk_forward.1} parent=0
    _
  %s5 = ssub.s32 1, %s3
  %s6 = scalar_select 0, %s5, %s3
  // Predicated region
  $region2: #{risk_forward.1} parent=0 // pred_check
    _
  $region3: #{risk_forward.1} parent=0 // pred_check_branch
    %8 = sbr.rel (0) target = $region5
  $region4: #{risk_forward.1} parent=0 // pred_region
    _
  $region5: #{risk_forward.1} parent=0 // pred_fallthru
    _
  // Predicated region
  $region6: #{risk_forward.1} parent=0 // pred_check
    _
  $region7: #{risk_forward.1} parent=0 // pred_check_branch
    %10 = sbr.rel (0) target = $region9
  $region8: #{risk_forward.1} parent=0 // pred_region
    _
  $region9: #{risk_forward.1} parent=0 // pred_fallthru
    _
  %v11 = vld [vmem:[%s0] sm:$0xff]
  %v12 = vld [vmem:[%s0 + $0x8] sm:$0xff]
  %v13 = vld [vmem:[%s1] sm:$0xff]
  %v14 = vld [vmem:[%s1 + $0x8] sm:$0xff]
  %v15 = vld [vmem:[%s1 + $0x10] sm:$0xff]
  %v16 = vld [vmem:[%s1 + $0x18] sm:$0xff]
  %v17 = vld [vmem:[%s1 + $0x20] sm:$0x1]
  %v18 = vld [vmem:[%s1 + $0x21] sm:$0x1]
  %v19 = vld [vmem:[%s1 + $0x22] sm:$0x1]
  %vm20 = vcmask 261120
  %v22 = vsel %vm20, %v11, 0
  %v25 = vsel %vm20, %v12, 0
  %27 = vmatprep.subr.mxu0 0.0
  %28 = vmatpush1.msra.mxu0 %v13
  %29 = vmatprep.subr.mxu0 0.0
  %30 = vmatpush1.msra.mxu0 %v14
  %31 = vmatprep.subr.mxu0 0.0
  %32 = vmatpush1.msra.mxu0 %v15
  %33 = vmatprep.subr.mxu0 0.0
  %34 = vmatpush1.msra.mxu0 %v16
  %35 = vmatprep.subr.mxu0 0.0
  %36 = vmatpush1.msra.mxu0 0.0
  %37 = vmatprep.subr.mxu0 0.0
  %38 = vmatpush1.msra.mxu0 0.0
  %39 = vmatprep.subr.mxu0 0.0
  %40 = vmatpush1.msra.mxu0 0.0
  %41 = vmatprep.subr.mxu0 0.0
  %42 = vmatpush1.msra.mxu0 0.0
  %43 = vmatprep.subr.mxu0 0.0
  %44 = vmatpush1.msra.mxu0 0.0
  %45 = vmatprep.subr.mxu0 0.0
  %46 = vmatpush1.msra.mxu0 0.0
  %47 = vmatprep.subr.mxu0 0.0
  %48 = vmatpush1.msra.mxu0 0.0
  %49 = vmatprep.subr.mxu0 0.0
  %50 = vmatpush1.msra.mxu0 0.0
  %51 = vmatprep.subr.mxu0 0.0
  %52 = vmatpush1.msra.mxu0 0.0
  %53 = vmatprep.subr.mxu0 0.0
  %54 = vmatpush1.msra.mxu0 0.0
  %55 = vmatprep.subr.mxu0 0.0
  %56 = vmatpush1.msra.mxu0 0.0
  %57 = vmatprep.subr.mxu0 0.0
  %58 = vmatpush1.msra.mxu0 0.0
  %59 = vmatprep.subr.mxu0 0.0
  %60 = vmatpush1.msra.mxu0 0.0
  %61 = vmatprep.subr.mxu0 0.0
  %62 = vmatpush1.msra.mxu0 0.0
  %63 = vmatprep.subr.mxu0 0.0
  %64 = vmatpush1.msra.mxu0 0.0
  %65 = vmatprep.subr.mxu0 0.0
  %66 = vmatpush1.msra.mxu0 0.0
  %67 = vmatprep.subr.mxu0 0.0
  %68 = vmatpush1.msra.mxu0 0.0
  %69 = vmatprep.subr.mxu0 0.0
  %70 = vmatpush1.msra.mxu0 0.0
  %71 = vmatprep.subr.mxu0 0.0
  %72 = vmatpush1.msra.mxu0 0.0
  %73 = vmatprep.subr.mxu0 0.0
  %74 = vmatpush1.msra.mxu0 0.0
  %75 = vmatprep.subr.mxu0 0.0
  %76 = vmatpush1.msra.mxu0 0.0
  %77 = vmatprep.subr.mxu0 0.0
  %78 = vmatpush1.msra.mxu0 0.0
  %79 = vmatprep.subr.mxu0 0.0
  %80 = vmatpush1.msra.mxu0 0.0
  %81 = vmatprep.subr.mxu0 0.0
  %82 = vmatpush1.msra.mxu0 0.0
  %83 = vmatprep.subr.mxu0 0.0
  %84 = vmatpush1.msra.mxu0 0.0
  %85 = vmatprep.subr.mxu0 0.0
  %86 = vmatpush1.msra.mxu0 0.0
  %87 = vmatprep.subr.mxu0 0.0
  %88 = vmatpush1.msra.mxu0 0.0
  %89 = vmatprep.subr.mxu0 0.0
  %90 = vmatpush1.msra.mxu0 0.0
  %91 = vmatprep.mubr.f32.mxu0 0.0
  %92 = vmatmul.mubr.f32.gmra.mrb[0].mxu0 %v22
  %v93 = vpop.f32.mrb[0].mxu0
  %v94 = vadd.f32 0.0, %v93
  %v95 = vpop.f32.mrb[0].mxu0
  %96 = vmatprep.mubr.f32.mxu0 0.0
  %97 = vmatmul.mubr.f32.gmra.mrb[0].mxu0 %v25
  %v98 = vpop.f32.mrb[0].mxu0
  %v99 = vadd.f32 0.0, %v98
  %v100 = vpop.f32.mrb[0].mxu0
  %101 = vdwg.mxu0
  %v102 = vlaneseq
  %v103 = vshrl.u32 %v102, 7
  %v104 = vsub.s32 0, %v103
  %v105 = vrot.slane %v17, %v104
  %v106 = vmul.f32 %v11, %v105
  %v107 = vmul.f32 %v12, %v105
  %v108 = vsel %vm20, %v106, 0.0
  %109 = vadd.xlane.f32.xlu0 %v108
  %v110 = vpop.xlane.xlu0 %109
  %v111 = vsel %vm20, %v107, 0.0
  %112 = vadd.xlane.f32.xlu0 %v111
  %v113 = vpop.xlane.xlu0 %112
  %vm114 = vcmp.eq.f32.partialorder %v11, 0.0
  %vm115 = vcmp.eq.f32.partialorder %v12, 0.0
  %v116 = vsel %vm114, -1e+09, %v110
  %v117 = vsel %vm115, -1e+09, %v113
  %vm118 = vcmask 269568
  %v119 = vsel %vm118, %v116, -inf
  %v120 = vrot.slane %v119, 4
  %v121 = vmax.f32 %v119, %v120
  %v122 = vrot.slane %v121, 2
  %v123 = vmax.f32 %v121, %v122
  %v124 = vrot.slane %v123, 1
  %v125 = vmax.f32 %v123, %v124
  %v126 = vsub.f32 %v116, %v125
  %v127 = vmul.f32 %v126, 1.442695
  %v128 = vpow.pop %v127
  %v129 = vsel %vm118, %v128, 0.0
  %v130 = vrot.slane %v129, 4
  %v131 = vadd.f32 %v129, %v130
  %v132 = vrot.slane %v131, 2
  %v133 = vadd.f32 %v131, %v132
  %v134 = vrot.slane %v133, 1
  %v135 = vadd.f32 %v133, %v134
  %v136 = vrcp.pop %v135
  %v137 = vmul.f32 %v128, %v136
  %139 = vset.pattern.permute.xlu0 32
  %140 = vperm.xlu0 %139, %v137
  %v141 = vpop.permute.xlu0 %140
  %v143 = vmul.f32 %v141, %v94
  %v144 = vsel %vm20, %v143, 0.0
  %v145 = vrot.slane %v144, 4
  %v146 = vadd.f32 %v144, %v145
  %v147 = vrot.slane %v146, 2
  %v148 = vadd.f32 %v146, %v147
  %v149 = vrot.slane %v148, 1
  %v150 = vadd.f32 %v148, %v149
  %v151 = vmax.f32 %v150, 0.0
  %v152 = vmul.f32 %v151, %v18
  %vm153 = vcmask 253952
  %v154 = vsel %vm153, %v152, 0.0
  %155 = vadd.xlane.f32.xlu0 %v154
  %v156 = vpop.xlane.xlu0 %155
  %v157 = vsel %vm118, %v117, -inf
  %v158 = vrot.slane %v157, 4
  %v159 = vmax.f32 %v157, %v158
  %v160 = vrot.slane %v159, 2
  %v161 = vmax.f32 %v159, %v160
  %v162 = vrot.slane %v161, 1
  %v163 = vmax.f32 %v161, %v162
  %v164 = vsub.f32 %v117, %v163
  %v165 = vmul.f32 %v164, 1.442695
  %v166 = vpow.pop %v165
  %v167 = vsel %vm118, %v166, 0.0
  %v168 = vrot.slane %v167, 4
  %v169 = vadd.f32 %v167, %v168
  %v170 = vrot.slane %v169, 2
  %v171 = vadd.f32 %v169, %v170
  %v172 = vrot.slane %v171, 1
  %v173 = vadd.f32 %v171, %v172
  %v174 = vrcp.pop %v173
  %v175 = vmul.f32 %v166, %v174
  %177 = vset.pattern.permute.xlu0 32
  %178 = vperm.xlu0 %177, %v175
  %v179 = vpop.permute.xlu0 %178
  %v181 = vmul.f32 %v179, %v99
  %v182 = vsel %vm20, %v181, 0.0
  %v183 = vrot.slane %v182, 4
  %v184 = vadd.f32 %v182, %v183
  %v185 = vrot.slane %v184, 2
  %v186 = vadd.f32 %v184, %v185
  %v187 = vrot.slane %v186, 1
  %v188 = vadd.f32 %v186, %v187
  %v189 = vmax.f32 %v188, 0.0
  %v190 = vmul.f32 %v189, %v18
  %v191 = vsel %vm153, %v190, 0.0
  %192 = vadd.xlane.f32.xlu0 %v191
  %v193 = vpop.xlane.xlu0 %192
  %v195 = vrot.slane %v193, 7
  %vm197 = vcmask 1040384
  %v198 = vsel %vm197, %v156, %v195
  %v199 = vlaneseq
  %v200 = vshrl.u32 %v199, 7
  %v201 = vsub.s32 0, %v200
  %v202 = vrot.slane %v19, %v201
  %v203 = vadd.f32 %v198, %v202
  %vm204 = vcmask 1024
  %205 = vst.msk [vmem:[%s2] sm:$0x3] %vm204, %v203
  // Predicated region
  $region10: #{risk_forward.1} parent=0 // pred_check
    _
  $region11: #{risk_forward.1} parent=0 // pred_check_branch
    %207 = sbr.rel (0) target = $region13
  $region12: #{risk_forward.1} parent=0 // pred_region
    _
  $region13: #{risk_forward.1} parent=0 // pred_fallthru
    _
  // Predicated region
  $region14: #{risk_forward.1} parent=0 // pred_check
    _
  $region15: #{risk_forward.1} parent=0 // pred_check_branch
    %209 = sbr.rel (0) target = $region17
  $region16: #{risk_forward.1} parent=0 // pred_region
    _
  $region17: #{risk_forward.1} parent=0 // pred_fallthru
    _

</llo_original>
